<compile_context>
chip_gen: v7x
topology: tpu7x:2x2x1
jax: 0.10.0
libtpu: 0.0.40
codegen_flags: <defaults>
</compile_context>

<pallas_src>
import jax
import jax.numpy as jnp
from jax.experimental import pallas as pl
from jax.experimental.pallas import tpu as pltpu


def snake1d_kernel(alpha_ref, x_ref, o_ref):
    # alpha_ref: (TILE_C, 1) VMEM tile (same channel slice for every B/T step)
    # x_ref    : (1, TILE_C, TILE_T) VMEM tile
    x = x_ref[...].astype(jnp.float32)              # (1, TC, TT)

    # Hoisted, narrow alpha math: (TC, 1) width only.
    a_col = alpha_ref[...].astype(jnp.float32)      # (TC, 1)
    inv_col = 1.0 / (a_col + 1e-9)                  # matches PyTorch reference

    a = a_col[None, :, :]                           # (1, TC, 1) -> bcast over T
    inv_a = inv_col[None, :, :]

    s = jnp.sin(a * x)
    o_ref[...] = (x + inv_a * (s * s)).astype(o_ref.dtype)


def _pick_tile(dim: int, align: int, cap: int) -> int:
    """Largest multiple of `align` that divides `dim` and is <= cap.

    Falls back to the full dim when `dim` is not `align`-aligned (a
    full-extent block is always legal w.r.t. the (8, 128) rule).
    """
    if dim % align != 0:
        return dim
    cand = (min(cap, dim) // align) * align
    while cand >= align:
        if dim % cand == 0:
            return cand
        cand -= align
    return dim


def snake1d(
    x: jax.Array,
    alpha: jax.Array,
    *,
    tile_t_target: int = 2048,
    block_budget_bytes: int = 3 * 1024 * 1024,  # per block; x4 for 2-buf in+out
) -> jax.Array:
    """x: (B, C, T), alpha: (C, 1) -> (B, C, T). Same dtype as x."""
    B, C, T = x.shape
    assert alpha.shape == (C, 1), f"alpha must be ({C}, 1), got {alpha.shape}"
    itemsize = jnp.dtype(x.dtype).itemsize

    # Lane-dense seq tile (multiple of 128, <= target, divides T exactly).
    tile_t = _pick_tile(T, 128, tile_t_target)
    # Channel tile sized so one block stays under the per-block VMEM budget.
    max_c = max(8, block_budget_bytes // max(1, tile_t * itemsize))
    tile_c = _pick_tile(C, 8, max_c)

    grid = (B, C // tile_c, T // tile_t)

    n = B * C * T
    cost = pl.CostEstimate(
        flops=5 * n,            # a*x, sin^2 mul, inv*gate mul, final add (+eps)
        transcendentals=n,      # one sin per element
        bytes_accessed=2 * n * itemsize + C * itemsize,
    )

    return pl.pallas_call(
        snake1d_kernel,
        out_shape=jax.ShapeDtypeStruct((B, C, T), x.dtype),
        grid_spec=pltpu.PrefetchScalarGridSpec(
            num_scalar_prefetch=0,
            grid=grid,
            in_specs=[
                # alpha: channel slice only; independent of batch / seq tile,
                # so Pallas only re-DMAs it when the channel block changes.
                pl.BlockSpec((tile_c, 1), lambda b, c, t: (c, 0)),
                # x: one (1, TILE_C, TILE_T) tile per grid step.
                pl.BlockSpec((1, tile_c, tile_t), lambda b, c, t: (b, c, t)),
            ],
            out_specs=pl.BlockSpec((1, tile_c, tile_t), lambda b, c, t: (b, c, t)),
        ),
        compiler_params=pltpu.CompilerParams(
            dimension_semantics=("parallel", "parallel", "parallel"),
        ),
        cost_estimate=cost,
    )(alpha, x)


def snake1d_ref(x: jax.Array, alpha: jax.Array) -> jax.Array:
    """Plain-JAX reference matching the PyTorch forward exactly."""
    a = alpha[None, :, :]                 # (1, C, 1)
    gate = jnp.sin(a * x) ** 2
    return x + (1.0 / (a + 1e-9)) * gate


if __name__ == "__main__":
    # Small shapes consistent with the module: (batch, dim, seq)
    B, DIM, SEQ = 2, 8, 128

    key = jax.random.PRNGKey(0)
    x = jax.random.normal(key, (B, DIM, SEQ), dtype=jnp.float32)

    # Parameter init as in Snake1d.__init__: alpha = ones(dim, 1)
    alpha = jnp.ones((DIM, 1), dtype=jnp.float32)

    out = snake1d(x, alpha)
    out = jax.block_until_ready(out)

    ref = snake1d_ref(x, alpha)
    assert out.shape == x.shape and out.dtype == x.dtype
    assert jnp.allclose(out, ref, atol=1e-6, rtol=1e-6), "mismatch vs reference"

    print("KERNEL_OK")
</pallas_src>

<mosaic_0001>
module attributes {stable_mosaic.version = 11 : i64} {
  func.func @snake1d_kernel(%arg0: i32, %arg1: i32, %arg2: i32, %arg3: memref<8x1xf32, #tpu.memory_space<vmem>>, %arg4: memref<1x8x128xf32, #tpu.memory_space<vmem>>, %arg5: memref<1x8x128xf32, #tpu.memory_space<vmem>>) attributes {dimension_semantics = [#tpu.dimension_semantics<parallel>, #tpu.dimension_semantics<parallel>, #tpu.dimension_semantics<parallel>], iteration_bounds = array<i64: 2, 1, 1>, scalar_prefetch = 0 : i64, scratch_operands = 0 : i64, tpu.core_type = #tpu.core_type<tc>, window_params = [{transform_indices = @transform_0, window_bounds = array<i64: 8, 1>}, {transform_indices = @transform_1, window_bounds = array<i64: 1, 8, 128>}, {transform_indices = @transform_2, window_bounds = array<i64: 1, 8, 128>}]} {
    %c0 = arith.constant 0 : index
    %c0_0 = arith.constant 0 : index
    %c0_1 = arith.constant 0 : index
    %0 = vector.load %arg4[%c0, %c0_0, %c0_1] : memref<1x8x128xf32, #tpu.memory_space<vmem>>, vector<1x8x128xf32>
    %c0_2 = arith.constant 0 : index
    %c0_3 = arith.constant 0 : index
    %1 = vector.load %arg3[%c0_2, %c0_3] : memref<8x1xf32, #tpu.memory_space<vmem>>, vector<8x1xf32>
    %cst = arith.constant 9.99999971E-10 : f32
    %2 = vector.broadcast %cst : f32 to vector<8x1xf32>
    %3 = arith.addf %1, %2 : vector<8x1xf32>
    %cst_4 = arith.constant 1.000000e+00 : f32
    %4 = vector.broadcast %cst_4 : f32 to vector<8x1xf32>
    %5 = arith.divf %4, %3 : vector<8x1xf32>
    %6 = vector.shape_cast %1 : vector<8x1xf32> to vector<1x8x1xf32>
    %7 = vector.shape_cast %5 : vector<8x1xf32> to vector<1x8x1xf32>
    %8 = vector.broadcast %6 : vector<1x8x1xf32> to vector<1x8x128xf32>
    %9 = arith.mulf %8, %0 : vector<1x8x128xf32>
    %10 = math.sin %9 : vector<1x8x128xf32>
    %11 = arith.mulf %10, %10 : vector<1x8x128xf32>
    %12 = vector.broadcast %7 : vector<1x8x1xf32> to vector<1x8x128xf32>
    %13 = arith.mulf %12, %11 : vector<1x8x128xf32>
    %14 = arith.addf %0, %13 : vector<1x8x128xf32>
    %c0_5 = arith.constant 0 : index
    %c0_6 = arith.constant 0 : index
    %c0_7 = arith.constant 0 : index
    %15 = vector.load %arg5[%c0_5, %c0_6, %c0_7] : memref<1x8x128xf32, #tpu.memory_space<vmem>>, vector<1x8x128xf32>
    tpu.vector_store %arg5[%c0_5, %c0_6, %c0_7], %14 {strides = array<i32>} : memref<1x8x128xf32, #tpu.memory_space<vmem>>, vector<1x8x128xf32>,
    return
  }
  func.func @transform_0(%arg0: i32, %arg1: i32, %arg2: i32) -> (i32, i32) {
    %c0_i32 = arith.constant 0 : i32
    %c0_i32_0 = arith.constant 0 : i32
    return %arg1, %c0_i32 : i32, i32
  }
  func.func @transform_1(%arg0: i32, %arg1: i32, %arg2: i32) -> (i32, i32, i32) {
    %c0_i32 = arith.constant 0 : i32
    return %arg0, %arg1, %arg2 : i32, i32, i32
  }
  func.func @transform_2(%arg0: i32, %arg1: i32, %arg2: i32) -> (i32, i32, i32) {
    %c0_i32 = arith.constant 0 : i32
    return %arg0, %arg1, %arg2 : i32, i32, i32
  }
}

</mosaic_0001>

<llo_original>
// kernel: tpu_custom_call.1
$region0: #{tpu_custom_call.1}
  #allocation0 [shape = 'u32[]', space=smem, size = 0x4, offset = 0x4, fixed_abs, tag = 'smem constant byte address 0x4 - core index']
  #allocation1 [shape = 'u32[144,128]{1,0:T(1,128)}', space=vmem, size = 0x12000, scoped, tag = 'internal scratch']
  %s0 = inlined_call_operand.vmem [shape: f32[8,1], index: 0, kind: input, shape index: {}]
  %s1 = inlined_call_operand.hbm [shape: f32[2,8,128], index: 1, kind: input, shape index: {}]
  %s2 = inlined_call_operand.hbm [shape: f32[2,8,128], index: 2, kind: output, shape index: {}]
  %s3 = sld [smem:[#allocation0]]
  $region45: #{tpu_custom_call.1} parent=0
    _
  %s5 = ssub.s32 1, %s3
  %s6 = scalar_select 0, %s5, %s3
  $region1: #{tpu_custom_call.1} parent=0
    #allocation2 [shape = 'u8[8192]{0}', space=vmem, size = 0x2000, scoped, tag = 'input window, operand 1']
    #allocation3 [shape = 's32[2]{0}', space=sflag, size = 0x8, scoped, tag = 'scoped memory for tpu_custom_call.1']
    #allocation4 [shape = 's32[2]{0}', space=sflag, size = 0x8, scoped, tag = 'scoped memory for tpu_custom_call.1']
    #allocation5 [shape = 'u8[8192]{0}', space=vmem, size = 0x2000, scoped, tag = 'output window, operand 0']
    %7 = vsyncpa [#allocation3], 0
    %s8 = scalar_lea.sflag [#allocation3], 1
    %9 = vsyncpa %s8, 0
    %10 = vsyncpa [#allocation4], 0
    %s11 = scalar_lea.sflag [#allocation4], 1
    %12 = vsyncpa %s11, 0
    loop: start=0, step=1, limit=4
    $region2: #{tpu_custom_call.1} parent=1 // loop_pre_header
      _
    $region3: #{tpu_custom_call.1} parent=1 // loop_header
      %s14 = sphi 0, %s18
      %p15 = scmp.ge.s32.totalorder %s14, 4
      %s21 = sphi 0, %s40
      %s22 = sphi 0, %s36
      %s23 = sphi 0, %s32
      %s24 = sphi 0, %s21
      %s25 = sphi 0, %s22
      %s26 = sphi 0, %s23
      %s27 = sphi 0, %s24
      %s28 = sphi 0, %s25
      %s29 = sphi 0, %s26
      %s43 = sphi 0, %s45
      %s46 = sphi 0, %s43
      %s47 = sphi 0, %s46
      %s63 = sphi 0, %s47
      %s73 = sphi 0, %s75
      %s76 = sphi 0, %s73
      %s77 = sphi 0, %s76
      %s93 = sphi 0, %s77
      %s103 = sphi 0, %s105
      %s106 = sphi 0, %s103
      %s107 = sphi 0, %s106
      %s123 = sphi 0, %s107
    $region4: #{tpu_custom_call.1} parent=1 // loop_header_branch
      %17 = sbr.rel (%p15) target = $region8
    $region5: #{tpu_custom_call.1} parent=1 // loop_body
      %s19 = ssub.s32 %s14, 1
      %s20 = ssub.s32 %s14, 2
      %s30 = sadd.s32 1, %s23
      %p31 = scmp.ge.s32.totalorder %s30, 1
      %s32 = scalar_select %p31, 0, %s30
      %s33 = sadd.s32 1, %s22
      %s34 = scalar_select %p31, %s33, %s22
      %p35 = scmp.ge.s32.totalorder %s34, 1
      %s36 = scalar_select %p35, 0, %s34
      %s37 = sadd.s32 1, %s21
      %s38 = scalar_select %p35, %s37, %s21
      %p39 = scmp.ge.s32.totalorder %s38, 2
      %s40 = scalar_select %p39, 0, %s38
      %s41 = ssub.s32 %s22, %s36
      %p42 = scmp.eq.s32.totalorder %s41, 0
      %s44 = sadd.s32 %s43, 1
      %s45 = scalar_select %p42, %s43, %s44
      %p48 = pneg %p42
      %p49 = scmp.eq.s32.totalorder %s14, 1
      %p50 = por %p48, %p49
      %p51 = scmp.ne.s32.totalorder %s43, %s46
      %p52 = scmp.eq.s32.totalorder %s14, 0
      %p53 = por %p51, %p52
      %p54 = scmp.ne.s32.totalorder %s43, %s46
      %p55 = scmp.eq.s32.totalorder %s19, 1
      %p56 = por %p54, %p55
      %p57 = scmp.ne.s32.totalorder %s46, %s47
      %p58 = scmp.eq.s32.totalorder %s19, 0
      %p59 = por %p57, %p58
      %p60 = scmp.ne.s32.totalorder %s46, %s47
      %p61 = scmp.eq.s32.totalorder %s20, 1
      %p62 = por %p60, %p61
      %p64 = scmp.ne.s32.totalorder %s47, %s63
      %p65 = scmp.eq.s32.totalorder %s20, 0
      %p66 = por %p64, %p65
      %s67 = ssub.s32 %s21, %s40
      %s68 = ssub.s32 %s22, %s36
      %s69 = sor.u32 %s67, %s68
      %s70 = ssub.s32 %s23, %s32
      %s71 = sor.u32 %s69, %s70
      %p72 = scmp.eq.s32.totalorder %s71, 0
      %s74 = sadd.s32 %s73, 1
      %s75 = scalar_select %p72, %s73, %s74
      %p78 = pneg %p72
      %p79 = scmp.eq.s32.totalorder %s14, 1
      %p80 = por %p78, %p79
      %p81 = scmp.ne.s32.totalorder %s73, %s76
      %p82 = scmp.eq.s32.totalorder %s14, 0
      %p83 = por %p81, %p82
      %p84 = scmp.ne.s32.totalorder %s73, %s76
      %p85 = scmp.eq.s32.totalorder %s19, 1
      %p86 = por %p84, %p85
      %p87 = scmp.ne.s32.totalorder %s76, %s77
      %p88 = scmp.eq.s32.totalorder %s19, 0
      %p89 = por %p87, %p88
      %p90 = scmp.ne.s32.totalorder %s76, %s77
      %p91 = scmp.eq.s32.totalorder %s20, 1
      %p92 = por %p90, %p91
      %p94 = scmp.ne.s32.totalorder %s77, %s93
      %p95 = scmp.eq.s32.totalorder %s20, 0
      %p96 = por %p94, %p95
      %s97 = ssub.s32 %s21, %s40
      %s98 = ssub.s32 %s22, %s36
      %s99 = sor.u32 %s97, %s98
      %s100 = ssub.s32 %s23, %s32
      %s101 = sor.u32 %s99, %s100
      %p102 = scmp.eq.s32.totalorder %s101, 0
      %s104 = sadd.s32 %s103, 1
      %s105 = scalar_select %p102, %s103, %s104
      %p108 = pneg %p102
      %p109 = scmp.eq.s32.totalorder %s14, 1
      %p110 = por %p108, %p109
      %p111 = scmp.ne.s32.totalorder %s103, %s106
      %p112 = scmp.eq.s32.totalorder %s14, 0
      %p113 = por %p111, %p112
      %p114 = scmp.ne.s32.totalorder %s103, %s106
      %p115 = scmp.eq.s32.totalorder %s19, 1
      %p116 = por %p114, %p115
      %p117 = scmp.ne.s32.totalorder %s106, %s107
      %p118 = scmp.eq.s32.totalorder %s19, 0
      %p119 = por %p117, %p118
      %p120 = scmp.ne.s32.totalorder %s106, %s107
      %p121 = scmp.eq.s32.totalorder %s20, 1
      %p122 = por %p120, %p121
      %p124 = scmp.ne.s32.totalorder %s107, %s123
      %p125 = scmp.eq.s32.totalorder %s20, 0
      %p126 = por %p124, %p125
      %p127 = scmp.le.s32.totalorder 1, %s14
      %p128 = scmp.lt.s32.totalorder %s14, 3
      %p129 = pnand %p127, %p128
      %p130 = pneg %p129
      // Predicated region
      $region9: #{tpu_custom_call.1} parent=5 // pred_check
        _
      $region10: #{tpu_custom_call.1} parent=5 // pred_check_branch
        %132 = sbr.rel (%p129) target = $region12
      $region11: #{tpu_custom_call.1} parent=5 // pred_region
        %s133 = ssub.s32 %s14, 1
        // Predicated region
        $region13: #{tpu_custom_call.1} parent=11 // pred_check
          %p134 = pneg %p59
        $region14: #{tpu_custom_call.1} parent=11 // pred_check_branch
          %136 = sbr.rel (%p134) target = $region16
        $region15: #{tpu_custom_call.1} parent=11 // pred_region
          %p137 = scmp.lt.s32.totalorder %s25, 0
          %s138 = scalar_select %p137, %s25, 0
          %s139 = smul.addr %s138, 8
          %s140 = scalar_lea.vmem %s0, %s139
        $region16: #{tpu_custom_call.1} parent=11 // pred_fallthru
          _
      $region12: #{tpu_custom_call.1} parent=5 // pred_fallthru
        _
      %p141 = scmp.lt.s32.totalorder %s14, 2
      // Predicated region
      $region17: #{tpu_custom_call.1} parent=5 // pred_check
        %p142 = pneg %p141
      $region18: #{tpu_custom_call.1} parent=5 // pred_check_branch
        %144 = sbr.rel (%p142) target = $region20
      $region19: #{tpu_custom_call.1} parent=5 // pred_region
        // Predicated region
        $region21: #{tpu_custom_call.1} parent=19 // pred_check
          %p145 = pneg %p83
        $region22: #{tpu_custom_call.1} parent=19 // pred_check_branch
          %147 = sbr.rel (%p145) target = $region24
        $region23: #{tpu_custom_call.1} parent=19 // pred_region
          %s148 = sand.u32 %s73, 1
          %s149 = scalar_lea.sflag [#allocation3], %s148
          %s150 = sand.u32 %s73, 1
          %s151 = smul.addr %s150, 8
          %s152 = scalar_lea.vmem [#allocation2], %s151
          %s154 = ssub.s32 128, 128
          %155 = vsyncadd %s149, %s154
          %s156 = sadd.s32 %s23, %s22
          %s157 = sadd.s32 %s156, %s21
          %s158 = smul.addr %s157, 128
          %s159 = scalar_lea.hbm %s1, %s158
          %s161 = sshll.u32 %s152, 4
          %s162 = int_to_ptr.vmem [resolvable:$true] %s161
          %164 = dma.hbm_to_vmem [thread:$0]  %s159, 128, %s162, %s149
        $region24: #{tpu_custom_call.1} parent=19 // pred_fallthru
          _
      $region20: #{tpu_custom_call.1} parent=5 // pred_fallthru
        _
      %p165 = scmp.le.s32.totalorder 1, %s14
      %p166 = scmp.lt.s32.totalorder %s14, 3
      %p167 = pnand %p165, %p166
      %p168 = pneg %p167
      // Predicated region
      $region25: #{tpu_custom_call.1} parent=5 // pred_check
        _
      $region26: #{tpu_custom_call.1} parent=5 // pred_check_branch
        %170 = sbr.rel (%p167) target = $region28
      $region27: #{tpu_custom_call.1} parent=5 // pred_region
        %s171 = ssub.s32 %s14, 1
        %s172 = sand.u32 %s76, 1
        %s173 = scalar_lea.sflag [#allocation3], %s172
        %s174 = sand.u32 %s76, 1
        %s175 = smul.addr %s174, 8
        %s176 = scalar_lea.vmem [#allocation2], %s175
        // Predicated region
        $region29: #{tpu_custom_call.1} parent=27 // pred_check
          %p177 = pneg %p89
        $region30: #{tpu_custom_call.1} parent=27 // pred_check_branch
          %179 = sbr.rel (%p177) target = $region32
        $region31: #{tpu_custom_call.1} parent=27 // pred_region
          %180 = dma.done %s173, 128
        $region32: #{tpu_custom_call.1} parent=27 // pred_fallthru
          _
        %p181 = scmp.lt.s32.totalorder %s25, 0
        %s182 = scalar_select %p181, %s25, 0
        %s183 = smul.addr %s182, 8
        %s184 = scalar_lea.vmem %s0, %s183
        %p185 = pneg %p59
        %p186 = pneg %p56
        %s187 = sand.u32 %s76, 1
        %s188 = scalar_lea.sflag [#allocation3], %s187
        %s189 = sand.u32 %s76, 1
        %s190 = smul.addr %s189, 8
        %s191 = scalar_lea.vmem [#allocation2], %s190
        %p192 = pneg %p89
        %p193 = pneg %p86
        %p194 = pneg %p119
        %p195 = pneg %p116
        %s196 = sand.u32 %s106, 1
        %s197 = scalar_lea.sflag [#allocation4], %s196
        %s198 = sand.u32 %s106, 1
        %s199 = smul.addr %s198, 8
        %s200 = scalar_lea.vmem [#allocation5], %s199
        %p201 = scmp.lt.s32.totalorder %s25, 0
        %s202 = scalar_select %p201, %s25, 0
        %s203 = smul.addr %s202, 8
        %s204 = scalar_lea.vmem %s0, %s203
        %v205 = vld [vmem:[%s176] sm:$0xff]
        %v206 = vld [vmem:[%s204] sm:$0xff]
        %v207 = vadd.f32 %v206, 1e-09
        %v208 = vrcp.pop %v207
        %v209 = vmul.f32 1.0, %v208
        %211 = vset.pattern.permute.xlu0 0
        %212 = vperm.xlu0 %211, %v206
        %v213 = vpop.permute.xlu0 %212
        %v215 = vmul.f32 %v213, %v205
        %v216 = vand.u32 2147483647, %v215
        %vm217 = vcmp.le.f32.partialorder %v216, 0.7853982
        %vm218 = vcmp.lt.s32.totalorder %v215, 0
        %v219 = vand.u32 %v215, 2139095040
        %v220 = vshrl.u32 %v219, 23
        %v221 = vsub.s32 %v220, 127
        %v222 = vand.u32 2147483647, %v215
        %v223 = vand.u32 %v222, 8388607
        %v224 = vor.u32 %v223, 8388608
        %v225 = vsub.s32 0, %v224
        %v226 = vadd.s32 %v221, 1
        %vm227 = vcmp.gt.s32.totalorder %v226, 0
        %v228 = vsel %vm227, %v226, 0
        %v229 = vshrl.u32 %v228, 5
        %v230 = vand.u32 %v228, 31
        %v231 = vsub.s32 32, %v230
        %v232 = vshrl.u32 683565275, %v231
        %v233 = vshll.u32 683565275, %v230
        %v234 = vshrl.u32 2475754826, %v231
        %v235 = vor.u32 %v233, %v234
        %v236 = vshll.u32 2475754826, %v230
        %v237 = vshrl.u32 2131351028, %v231
        %v238 = vor.u32 %v236, %v237
        %v239 = vshll.u32 2131351028, %v230
        %v240 = vshrl.u32 2102212464, %v231
        %v241 = vor.u32 %v239, %v240
        %v242 = vshll.u32 2102212464, %v230
        %v243 = vshrl.u32 920167782, %v231
        %v244 = vor.u32 %v242, %v243
        %v245 = vshll.u32 920167782, %v230
        %v246 = vshrl.u32 1326507024, %v231
        %v247 = vor.u32 %v245, %v246
        %vm248 = vcmp.lt.s32.totalorder %v229, 1
        %vm249 = vcmp.lt.s32.totalorder %v229, 2
        %vm250 = vcmp.lt.s32.totalorder %v229, 3
        %vm251 = vcmp.lt.s32.totalorder %v229, 4
        %v252 = vsel %vm248, %v232, %v235
        %v253 = vsel %vm251, %v241, 2102212464
        %v254 = vsel %vm250, %v238, %v253
        %v255 = vsel %vm249, %v252, %v254
        %v256 = vsel %vm248, %v235, %v238
        %v257 = vsel %vm251, %v244, 920167782
        %v258 = vsel %vm250, %v241, %v257
        %v259 = vsel %vm249, %v256, %v258
        %v260 = vsel %vm248, %v238, %v241
        %v261 = vsel %vm251, %v247, 1326507024
        %v262 = vsel %vm250, %v244, %v261
        %v263 = vsel %vm249, %v260, %v262
        %v264 = vshll.u32 %v224, 8
        %v265 = vmul.u32.u64.compose %v264, %v263
        %v266 = vextract.low.u32 %v265
        %v267 = vextract.high.u32 %v265
        %v268 = vmul.u32.u64.compose %v264, %v259
        %v269 = vextract.low.u32 %v268
        %v270 = vextract.high.u32 %v268
        %v271 = vmul.u32 %v264, %v255
        %v272 = vadd.s32 %v267, %v269
        %vm273 = vc.u32 %v267, %v269
        %v274 = vadd.s32 %v270, 1
        %v275 = vsel %vm273, %v274, %v270
        %v276 = vadd.s32 %v271, %v275
        %v277 = vadd.s32 %v276, 536870912
        %v278 = vshrl.u32 %v277, 30
        %v279 = vshll.u32 %v278, 30
        %v280 = vsub.s32 %v276, %v279
        %vm281 = vcmp.lt.s32.totalorder %v280, 0
        %v282 = vsub.s32 0, %v280
        %v283 = vsel %vm281, %v282, %v280
        %v284 = vclz %v283
        %v285 = vsub.s32 %v284, 2
        %vm286 = vcmp.gt.s32.totalorder 0, %v285
        %v287 = vsel %vm286, 0, %v285
        %v288 = vsub.s32 32, %v287
        %v289 = vshll.u32 %v280, %v287
        %v290 = vshrl.u32 %v272, %v288
        %v291 = vor.u32 %v289, %v290
        %v292 = vsub.s32 4294967266, %v287
        %v293 = vadd.s32 %v292, 127
        %v294 = vshll.u32 %v293, 23
        %v295 = vor.u32 4788187, %v294
        %v296 = vand.u32 2147483647, %v295
        %v298 = vcvt.s32.f32 %v291
        %v299 = vmul.f32 %v298, %v296
        %v300 = vxor.u32 %v299, 2147483648
        %v301 = vsel %vm218, %v300, %v299
        %v302 = vsub.s32 4, %v278
        %v303 = vsel %vm218, %v302, %v278
        %v304 = vsel %vm217, %v215, %v301
        %v305 = vsel %vm217, 0, %v303
        %v306 = vcosq.f32.pop %v304
        %v307 = vsinq.f32.pop %v304
        %vm308 = vweird.f32 %v215
        %v309 = vadd.s32 %v305, 3
        %v310 = vand.u32 %v309, 3
        %vm311 = vcmp.lt.s32.totalorder %v310, 2
        %vm312 = vcmp.eq.s32.totalorder %v310, 0
        %v313 = vxor.u32 %v307, 2147483648
        %v314 = vsel %vm312, %v306, %v313
        %vm315 = vcmp.eq.s32.totalorder %v310, 2
        %v316 = vxor.u32 %v306, 2147483648
        %v317 = vsel %vm315, %v316, %v307
        %v318 = vsel %vm311, %v314, %v317
        %v319 = vsel %vm308, nan, %v318
        %v320 = vmul.f32 %v319, %v319
        %322 = vset.pattern.permute.xlu0 0
        %323 = vperm.xlu0 %322, %v209
        %v324 = vpop.permute.xlu0 %323
        %v326 = vmul.f32 %v324, %v320
        %v327 = vadd.f32 %v205, %v326
        %328 = vst [vmem:[%s200] sm:$0xff] %v327
        %s329 = sand.u32 %s106, 1
        %s330 = scalar_lea.sflag [#allocation4], %s329
        %s331 = sand.u32 %s106, 1
        %s332 = smul.addr %s331, 8
        %s333 = scalar_lea.vmem [#allocation5], %s332
        // Predicated region
        $region33: #{tpu_custom_call.1} parent=27 // pred_check
          %p334 = pneg %p116
        $region34: #{tpu_custom_call.1} parent=27 // pred_check_branch
          %336 = sbr.rel (%p334) target = $region36
        $region35: #{tpu_custom_call.1} parent=27 // pred_region
          %s338 = ssub.s32 128, 128
          %339 = vsyncadd %s330, %s338
          %s340 = sadd.s32 %s26, %s25
          %s341 = sadd.s32 %s340, %s24
          %s342 = smul.addr %s341, 128
          %s343 = scalar_lea.hbm %s2, %s342
          %s345 = sshll.u32 %s333, 4
          %s346 = int_to_ptr.vmem [resolvable:$true] %s345
          %348 = dma.vmem_to_hbm [thread:$0]  %s346, 128, %s343, %s330
        $region36: #{tpu_custom_call.1} parent=27 // pred_fallthru
          _
      $region28: #{tpu_custom_call.1} parent=5 // pred_fallthru
        _
      %p349 = scmp.le.s32.totalorder 2, %s14
      // Predicated region
      $region37: #{tpu_custom_call.1} parent=5 // pred_check
        %p350 = pneg %p349
      $region38: #{tpu_custom_call.1} parent=5 // pred_check_branch
        %352 = sbr.rel (%p350) target = $region40
      $region39: #{tpu_custom_call.1} parent=5 // pred_region
        %s353 = ssub.s32 %s14, 2
        // Predicated region
        $region41: #{tpu_custom_call.1} parent=39 // pred_check
          %p354 = pneg %p122
        $region42: #{tpu_custom_call.1} parent=39 // pred_check_branch
          %356 = sbr.rel (%p354) target = $region44
        $region43: #{tpu_custom_call.1} parent=39 // pred_region
          %s357 = sand.u32 %s107, 1
          %s358 = scalar_lea.sflag [#allocation4], %s357
          %s359 = sand.u32 %s107, 1
          %s360 = smul.addr %s359, 8
          %s361 = scalar_lea.vmem [#allocation5], %s360
          %362 = dma.done %s358, 128
        $region44: #{tpu_custom_call.1} parent=39 // pred_fallthru
          _
      $region40: #{tpu_custom_call.1} parent=5 // pred_fallthru
        _
    $region6: #{tpu_custom_call.1} parent=1 // loop_footer
      %s18 = sadd.s32 1, %s14
    $region7: #{tpu_custom_call.1} parent=1 // loop_footer_branch
      %13 = sbr.rel target = $region3
    $region8: #{tpu_custom_call.1} parent=1 // loop_exit
      _
    %363 = vsyncpa [#allocation3], 1
    %s364 = scalar_lea.sflag [#allocation3], 1
    %365 = vsyncpa %s364, 1
    %366 = vsyncpa [#allocation4], 1
    %s367 = scalar_lea.sflag [#allocation4], 1
    %368 = vsyncpa %s367, 1

</llo_original>
